<compile_context>
chip_gen: v7x
topology: tpu7x:2x2x1
jax: 0.10.0
libtpu: 0.0.40
codegen_flags: <defaults>
</compile_context>

<pallas_src>
import jax
import jax.numpy as jnp
from jax import lax
from jax.experimental import pallas as pl
from jax.experimental.pallas import tpu as pltpu

LANE = 128                    # vreg lane width (last dim)
SUBLANE = 8                   # f32 sublanes per vreg
TILE_ROWS = 8192              # rows per grid step: 4 MiB f32 / input / buffer
CHUNK_ROWS = 512              # in-kernel compute chunk (bounds temporaries)
SINGLE_SHOT_MAX_ROWS = 2048   # <= 1 MiB f32 per input -> one grid step
VMEM_LIMIT_BYTES = 32 * 1024 * 1024


def _sumsq_single_kernel(x1_ref, x2_ref, out_ref):
    """Single-shot: full arrays resident in VMEM, one reduction, scalar out."""
    diff = x1_ref[...].astype(jnp.float32) - x2_ref[...].astype(jnp.float32)
    out_ref[0, 0] = jnp.sum(diff * diff)


def _make_tiled_kernel(rows, steps_per_core, needs_mask):
    """Tiled reduction kernel; `rows` is the static valid row count."""

    def kernel(x1_ref, x2_ref, out_ref, acc_ref):
        c = pl.program_id(0)      # core chunk ("parallel")
        i = pl.program_id(1)      # sequential reduction step ("arbitrary")

        @pl.when(i == 0)
        def _():
            acc_ref[c] = jnp.zeros((SUBLANE, LANE), jnp.float32)

        row_base = (c * steps_per_core + i) * TILE_ROWS

        def body(j, carry):
            r0 = pl.multiple_of(j * CHUNK_ROWS, CHUNK_ROWS)
            a = x1_ref[pl.ds(r0, CHUNK_ROWS), :].astype(jnp.float32)
            b = x2_ref[pl.ds(r0, CHUNK_ROWS), :].astype(jnp.float32)
            d = a - b
            sq = d * d
            if needs_mask:
                rid = (row_base + r0
                       + lax.broadcasted_iota(jnp.int32, (CHUNK_ROWS, LANE), 0))
                sq = jnp.where(rid < rows, sq, 0.0)
            # vreg-aligned (n, 8, 128) partial reduce: pure VPU, no XLU.
            return carry + jnp.sum(
                sq.reshape(CHUNK_ROWS // SUBLANE, SUBLANE, LANE), axis=0)

        partial = lax.fori_loop(0, TILE_ROWS // CHUNK_ROWS, body,
                                jnp.zeros((SUBLANE, LANE), jnp.float32))
        acc_ref[c] += partial

        @pl.when(i == steps_per_core - 1)
        def _():
            out_ref[0, 0] = jnp.sum(acc_ref[c])   # cross-lane reduce paid once

    return kernel


def _sum_of_squared_diff(x1, x2):
    """Pallas-backed sum((x1 - x2)**2) over all elements (f32 result)."""
    x1 = jnp.asarray(x1)
    x2 = jnp.asarray(x2)
    if not jnp.issubdtype(x1.dtype, jnp.floating):
        x1 = x1.astype(jnp.float32)
    if not jnp.issubdtype(x2.dtype, jnp.floating):
        x2 = x2.astype(jnp.float32)
    if x1.shape != x2.shape:
        x1, x2 = jnp.broadcast_arrays(x1, x2)

    x1 = x1.reshape(-1)
    x2 = x2.reshape(-1)
    total = x1.size

    rem = total % LANE
    if rem:
        # TODO(synk): a dedicated tail kernel would avoid this whole-array pad
        # copy for totals not divisible by 128; typical NCHW cases never hit it.
        pad = LANE - rem
        x1 = jnp.pad(x1, (0, pad))
        x2 = jnp.pad(x2, (0, pad))
    rows = x1.size // LANE
    x1f = x1.reshape(rows, LANE)
    x2f = x2.reshape(rows, LANE)

    if rows <= SINGLE_SHOT_MAX_ROWS:
        # Whole problem in one grid step: no scratch, no phases.
        out = pl.pallas_call(
            _sumsq_single_kernel,
            out_shape=jax.ShapeDtypeStruct((1, 1), jnp.float32),
            grid_spec=pl.GridSpec(
                grid=(1,),
                in_specs=[
                    pl.BlockSpec((rows, LANE), lambda i: (0, 0)),
                    pl.BlockSpec((rows, LANE), lambda i: (0, 0)),
                ],
                out_specs=pl.BlockSpec((1, 1), lambda i: (0, 0),
                                       memory_space=pltpu.SMEM),
            ),
        )(x1f, x2f)
        return out[0, 0]

    # ---- Tiled path -------------------------------------------------------
    total_steps = pl.cdiv(rows, TILE_ROWS)          # logical row-blocks
    ncores = 2 if total_steps >= 2 else 1           # v7x megacore split
    spc = pl.cdiv(total_steps, ncores)               # steps per core
    # Does the (ncores * spc) grid cover more rows than exist?
    needs_mask = (ncores * spc * TILE_ROWS) != rows

    kernel = _make_tiled_kernel(rows, spc, needs_mask)
    # Clamp so fully-out-of-range logical blocks re-read the last valid block
    # (their contribution is zeroed by the in-kernel row mask).
    in_map = lambda c, i: (jnp.minimum(c * spc + i, total_steps - 1), 0)

    partials = pl.pallas_call(
        kernel,
        out_shape=jax.ShapeDtypeStruct((ncores, 1), jnp.float32),
        grid_spec=pltpu.PrefetchScalarGridSpec(
            num_scalar_prefetch=0,
            grid=(ncores, spc),
            in_specs=[
                pl.BlockSpec((TILE_ROWS, LANE), in_map),
                pl.BlockSpec((TILE_ROWS, LANE), in_map),
            ],
            out_specs=pl.BlockSpec((1, 1), lambda c, i: (c, 0),
                                   memory_space=pltpu.SMEM),
            scratch_shapes=[pltpu.VMEM((ncores, SUBLANE, LANE), jnp.float32)],
        ),
        compiler_params=pltpu.CompilerParams(
            dimension_semantics=("parallel", "arbitrary"),
            vmem_limit_bytes=VMEM_LIMIT_BYTES,
        ),
    )(x1f, x2f)
    return jnp.sum(partials)


def contrastive_loss(y, x1, x2, m):
    """Matches ContrastiveLoss.forward(y, x1, x2, m) of the PyTorch module."""
    sumsq = _sum_of_squared_diff(x1, x2)          # == d**2 (better numerics)
    y = jnp.asarray(y, jnp.float32)
    m = jnp.asarray(m, jnp.float32)
    d = jnp.sqrt(sumsq)
    hinge = jnp.maximum(jnp.float32(0.0), m - d)
    return (1.0 - y) * sumsq + y * hinge * hinge


def _reference_loss(y, x1, x2, m):
    x1 = jnp.asarray(x1, jnp.float32)
    x2 = jnp.asarray(x2, jnp.float32)
    d = jnp.sqrt(jnp.sum((x1 - x2) ** 2))
    return (1.0 - y) * d ** 2 + y * jnp.maximum(0.0, m - d) ** 2


if __name__ == "__main__":
    key = jax.random.PRNGKey(0)
    k1, k2, k3, k4 = jax.random.split(key, 4)

    # --- Module-sized case (NCHW, as the PyTorch module would receive) ------
    x1 = jax.random.normal(k1, (2, 4, 16, 16), dtype=jnp.float32)
    x2 = jax.random.normal(k2, (2, 4, 16, 16), dtype=jnp.float32)
    y = 2.0   # module-level global y = 2
    m = 4.0   # module-level global m = 4.0

    loss = jax.block_until_ready(contrastive_loss(y, x1, x2, m))
    ref = _reference_loss(y, x1, x2, m)
    assert jnp.allclose(loss, ref, rtol=1e-5, atol=1e-5), (loss, ref)

    # --- Exercise the tiled two-core path (ragged last tile + clamped block) -
    n_big = 2 * TILE_ROWS * LANE + 5000 * LANE - 50   # not /128, not /TILE
    a = jax.random.normal(k3, (n_big,), dtype=jnp.float32)
    b = jax.random.normal(k4, (n_big,), dtype=jnp.float32)
    got = jax.block_until_ready(_sum_of_squared_diff(a, b))
    want = jnp.sum((a - b) ** 2)
    assert jnp.allclose(got, want, rtol=1e-3), (got, want)

    print("KERNEL_OK")
</pallas_src>

<mosaic_0001>
module attributes {stable_mosaic.version = 11 : i64} {
  func.func @_sumsq_single_kernel(%arg0: i32, %arg1: memref<16x128xf32, #tpu.memory_space<vmem>>, %arg2: memref<16x128xf32, #tpu.memory_space<vmem>>, %arg3: memref<1x1xf32, #tpu.memory_space<smem>>) attributes {dimension_semantics = [#tpu.dimension_semantics<arbitrary>], iteration_bounds = array<i64: 1>, scalar_prefetch = 0 : i64, scratch_operands = 0 : i64, tpu.core_type = #tpu.core_type<tc>, window_params = [{pipeline_mode = #tpu.pipeline_mode<synchronous>, transform_indices = @transform_0, window_bounds = array<i64: 16, 128>}, {pipeline_mode = #tpu.pipeline_mode<synchronous>, transform_indices = @transform_1, window_bounds = array<i64: 16, 128>}, {transform_indices = @transform_2, window_bounds = array<i64: 1, 1>}]} {
    %c0 = arith.constant 0 : index
    %c0_0 = arith.constant 0 : index
    %0 = vector.load %arg1[%c0, %c0_0] : memref<16x128xf32, #tpu.memory_space<vmem>>, vector<16x128xf32>
    %c0_1 = arith.constant 0 : index
    %c0_2 = arith.constant 0 : index
    %1 = vector.load %arg2[%c0_1, %c0_2] : memref<16x128xf32, #tpu.memory_space<vmem>>, vector<16x128xf32>
    %2 = arith.subf %0, %1 : vector<16x128xf32>
    %3 = arith.mulf %2, %2 : vector<16x128xf32>
    %4 = vector.shape_cast %3 : vector<16x128xf32> to vector<1x16x128xf32>
    %cst = arith.constant dense<0.000000e+00> : vector<1xf32>
    %5 = vector.multi_reduction <add>, %4, %cst [1, 2] : vector<1x16x128xf32> to vector<1xf32>
    %6 = vector.shape_cast %5 : vector<1xf32> to vector<1x1x1xf32>
    %7 = vector.extract %6[0, 0, 0] : f32 from vector<1x1x1xf32>
    %c0_3 = arith.constant 0 : index
    %c0_4 = arith.constant 0 : index
    %8 = memref.load %arg3[%c0_3, %c0_4] : memref<1x1xf32, #tpu.memory_space<smem>>
    memref.store %7, %arg3[%c0_3, %c0_4] : memref<1x1xf32, #tpu.memory_space<smem>>
    return
  }
  func.func @transform_0(%arg0: i32) -> (i32, i32) {
    %c0_i32 = arith.constant 0 : i32
    %c0_i32_0 = arith.constant 0 : i32
    %c0_i32_1 = arith.constant 0 : i32
    return %c0_i32, %c0_i32_0 : i32, i32
  }
  func.func @transform_1(%arg0: i32) -> (i32, i32) {
    %c0_i32 = arith.constant 0 : i32
    %c0_i32_0 = arith.constant 0 : i32
    %c0_i32_1 = arith.constant 0 : i32
    return %c0_i32, %c0_i32_0 : i32, i32
  }
  func.func @transform_2(%arg0: i32) -> (i32, i32) {
    %c0_i32 = arith.constant 0 : i32
    %c0_i32_0 = arith.constant 0 : i32
    %c0_i32_1 = arith.constant 0 : i32
    return %c0_i32, %c0_i32_0 : i32, i32
  }
}

</mosaic_0001>

<llo_original>
// kernel: tpu_custom_call.1
$region0: #{tpu_custom_call.1}
  #allocation0 [shape = 'u32[]', space=smem, size = 0x4, offset = 0x4, fixed_abs, tag = 'smem constant byte address 0x4 - core index']
  #allocation1 [shape = 'u32[144,128]{1,0:T(1,128)}', space=vmem, size = 0x12000, scoped, tag = 'internal scratch']
  %s0 = inlined_call_operand.hbm [shape: f32[16,128], index: 0, kind: input, shape index: {}]
  %s1 = inlined_call_operand.hbm [shape: f32[16,128], index: 1, kind: input, shape index: {}]
  %s2 = inlined_call_operand.hbm [shape: f32[1,1], index: 2, kind: output, shape index: {}]
  %s3 = sld [smem:[#allocation0]]
  $region26: #{tpu_custom_call.1} parent=0
    _
  %s5 = ssub.s32 1, %s3
  %s6 = scalar_select 0, %s5, %s3
  $region1: #{tpu_custom_call.1} parent=0
    #allocation2 [shape = 'u8[8192]{0}', space=vmem, size = 0x2000, scoped, tag = 'input window, operand 0, single buffered']
    #allocation3 [shape = 's32[1]{0}', space=sflag, size = 0x4, scoped, tag = 'scoped memory for tpu_custom_call.1']
    #allocation4 [shape = 's32[1]{0}', space=sflag, size = 0x4, scoped, tag = 'scoped memory for tpu_custom_call.1']
    #allocation5 [shape = 'u8[8192]{0}', space=vmem, size = 0x2000, scoped, tag = 'input window, operand 1, single buffered']
    #allocation6 [shape = 's32[1]{0}', space=sflag, size = 0x4, scoped, tag = 'scoped memory for tpu_custom_call.1']
    #allocation7 [shape = 'u8[512]{0}', space=smem, size = 0x200, scoped, tag = 'output window, operand 0, single buffered']
    %7 = vsyncpa [#allocation3], 0
    %8 = vsyncpa [#allocation6], 0
    %9 = vsyncpa [#allocation4], 0
    // Predicated region
    $region2: #{tpu_custom_call.1} parent=1 // pred_check
      _
    $region3: #{tpu_custom_call.1} parent=1 // pred_check_branch
      %11 = sbr.rel (0) target = $region5
    $region4: #{tpu_custom_call.1} parent=1 // pred_region
      %s13 = ssub.s32 256, 256
      %14 = vsyncadd [#allocation3], %s13
      %s15 = sshll.u32 [#allocation2], 4
      %s16 = int_to_ptr.vmem [resolvable:$true] %s15
      %21 = dma.hbm_to_vmem [thread:$0]  %s0, 256, %s16, [#allocation3], 128, 128, 8
    $region5: #{tpu_custom_call.1} parent=1 // pred_fallthru
      _
    // Predicated region
    $region6: #{tpu_custom_call.1} parent=1 // pred_check
      _
    $region7: #{tpu_custom_call.1} parent=1 // pred_check_branch
      %23 = sbr.rel (0) target = $region9
    $region8: #{tpu_custom_call.1} parent=1 // pred_region
      %s25 = ssub.s32 256, 256
      %26 = vsyncadd [#allocation6], %s25
      %s27 = sshll.u32 [#allocation5], 4
      %s28 = int_to_ptr.vmem [resolvable:$true] %s27
      %33 = dma.hbm_to_vmem [thread:$0]  %s1, 256, %s28, [#allocation6], 128, 128, 8
    $region9: #{tpu_custom_call.1} parent=1 // pred_fallthru
      _
    // Predicated region
    $region10: #{tpu_custom_call.1} parent=1 // pred_check
      _
    $region11: #{tpu_custom_call.1} parent=1 // pred_check_branch
      %35 = sbr.rel (0) target = $region13
    $region12: #{tpu_custom_call.1} parent=1 // pred_region
      %36 = dma.done [#allocation3], 256
    $region13: #{tpu_custom_call.1} parent=1 // pred_fallthru
      _
    // Predicated region
    $region14: #{tpu_custom_call.1} parent=1 // pred_check
      _
    $region15: #{tpu_custom_call.1} parent=1 // pred_check_branch
      %38 = sbr.rel (0) target = $region17
    $region16: #{tpu_custom_call.1} parent=1 // pred_region
      %39 = dma.done [#allocation6], 256
    $region17: #{tpu_custom_call.1} parent=1 // pred_fallthru
      _
    %v40 = vld [vmem:[#allocation2] sm:$0xff]
    %v41 = vld [vmem:[#allocation2 + $0x8] sm:$0xff]
    %v42 = vld [vmem:[#allocation5] sm:$0xff]
    %v43 = vld [vmem:[#allocation5 + $0x8] sm:$0xff]
    %v44 = vsub.f32 %v40, %v42
    %v45 = vsub.f32 %v41, %v43
    %v46 = vmul.f32 %v44, %v44
    %v47 = vmul.f32 %v45, %v45
    %v48 = vadd.f32 %v46, %v47
    %49 = vadd.xlane.f32.xlu0 %v48
    %v50 = vpop.xlane.xlu0 %49
    %v51 = vrot.slane %v50, 4
    %v52 = vadd.f32 %v50, %v51
    %v53 = vrot.slane %v52, 2
    %v54 = vadd.f32 %v52, %v53
    %v55 = vrot.slane %v54, 1
    %v56 = vadd.f32 %v54, %v55
    %s57 = vtos %v56
    %s58 = scalar_lea.smem [#allocation7], 0
    %59 = sst [smem:[%s58]] %s57
    // Predicated region
    $region18: #{tpu_custom_call.1} parent=1 // pred_check
      _
    $region19: #{tpu_custom_call.1} parent=1 // pred_check_branch
      %61 = sbr.rel (0) target = $region21
    $region20: #{tpu_custom_call.1} parent=1 // pred_region
      %s63 = ssub.s32 16, 16
      %64 = vsyncadd [#allocation4], %s63
      %67 = dma.smem_to_hbm [#allocation7], 16, %s2, [#allocation4]
    $region21: #{tpu_custom_call.1} parent=1 // pred_fallthru
      _
    // Predicated region
    $region22: #{tpu_custom_call.1} parent=1 // pred_check
      _
    $region23: #{tpu_custom_call.1} parent=1 // pred_check_branch
      %69 = sbr.rel (0) target = $region25
    $region24: #{tpu_custom_call.1} parent=1 // pred_region
      %70 = dma.done [#allocation4], 16
    $region25: #{tpu_custom_call.1} parent=1 // pred_fallthru
      _
    %71 = sfence
    %72 = vsyncpa [#allocation3], 1
    %73 = vsyncpa [#allocation6], 1
    %74 = vsyncpa [#allocation4], 1

</llo_original>
